<compile_context>
chip_gen: v6e
topology: v6e:2x2x1
jax: 0.10.0
libtpu: 0.0.40
codegen_flags: <defaults>
</compile_context>

<pallas_src>
import jax
import jax.numpy as jnp
from jax.experimental import pallas as pl
from jax.experimental.pallas import tpu as pltpu


def _interp_pad_kernel(x_ref, o_ref):
    """x_ref block: (B, H, W); o_ref block: (B, H+2, W+2). One full-tile store."""
    x = x_ref[...]                               # (B, H, W), input dtype
    _, h, w = x.shape
    dt = o_ref.dtype

    # Upcast only the border rows/cols to f32 (2 rows + 2 cols per slab), so
    # low-precision inputs never materialize a full-block f32 copy in VMEM.
    r0 = x[:, 0:1, :].astype(jnp.float32)        # row 0        (B, 1, W)
    r1 = x[:, 1:2, :].astype(jnp.float32)        # row 1
    rh = x[:, h - 1:h, :].astype(jnp.float32)    # row H-1
    rg = x[:, h - 2:h - 1, :].astype(jnp.float32)  # row H-2
    c0 = x[:, :, 0:1].astype(jnp.float32)        # col 0        (B, H, 1)
    c1 = x[:, :, 1:2].astype(jnp.float32)        # col 1
    cw = x[:, :, w - 1:w].astype(jnp.float32)    # col W-1
    cg = x[:, :, w - 2:w - 1].astype(jnp.float32)  # col W-2

    # Extrapolated edges: 2*border - next_inner.
    top = 2.0 * r0 - r1                          # (B, 1, W)
    bot = 2.0 * rh - rg                          # (B, 1, W)
    left = 2.0 * c0 - c1                         # (B, H, 1)
    right = 2.0 * cw - cg                        # (B, H, 1)

    # Corners: average of the two adjacent extrapolated border cells.
    c00 = (top[:, :, 0:1] + left[:, 0:1, :]) * 0.5          # (B, 1, 1)
    c0w = (top[:, :, w - 1:w] + right[:, 0:1, :]) * 0.5
    ch0 = (bot[:, :, 0:1] + left[:, h - 1:h, :]) * 0.5
    chw = (bot[:, :, w - 1:w] + right[:, h - 1:h, :]) * 0.5

    # Assemble the full padded tile in-register, then store once, aligned.
    mid = jnp.concatenate(
        [left.astype(dt), x, right.astype(dt)], axis=2)     # (B, H,   W+2)
    top_row = jnp.concatenate([c00, top, c0w], axis=2).astype(dt)  # (B, 1, W+2)
    bot_row = jnp.concatenate([ch0, bot, chw], axis=2).astype(dt)  # (B, 1, W+2)
    o_ref[...] = jnp.concatenate([top_row, mid, bot_row], axis=1)  # (B, H+2, W+2)


def _padded_tile_bytes(rows, cols, itemsize):
    """Actual VMEM bytes of one (rows, cols) slab after (sublane, 128) tiling."""
    sublane = max(8, 32 // itemsize)    # 8 for f32, 16 for bf16, 32 for int8/fp8
    rows_p = pl.cdiv(rows, sublane) * sublane
    cols_p = pl.cdiv(cols, 128) * 128
    return rows_p * cols_p * itemsize


def interpolation_padding_2d(x, *, vmem_budget_bytes=40 * 1024 * 1024):
    """Pallas equivalent of InterpolationPadding2d.forward (1 px padding)."""
    n, c, h, w = x.shape
    assert h >= 2 and w >= 2, "InterpolationPadding2d needs H >= 2 and W >= 2"
    nc = n * c
    x_flat = x.reshape(nc, h, w)
    itemsize = jnp.dtype(x.dtype).itemsize

    # Per-slab PADDED VMEM cost: double-buffered input + output blocks, plus
    # ~2 output-block-sized in-kernel temporaries (the full tile is assembled
    # in registers/VMEM before the single store).
    in_bytes = _padded_tile_bytes(h, w, itemsize)
    out_bytes = _padded_tile_bytes(h + 2, w + 2, itemsize)
    per_slab = 2 * in_bytes + 4 * out_bytes

    # Biggest batch of slabs that fits the (generation-safe) VMEM budget;
    # 40 MiB working set stays well inside v7x's 64 MiB physical VMEM and is
    # comfortably raised via vmem_limit_bytes on v5e/v6e (128 MiB physical).
    b = max(1, min(nc, vmem_budget_bytes // per_slab))
    # Keep >= 4 grid steps when nc allows, so each of v7x's two TensorCores
    # gets >= 2 steps and still overlaps DMA with compute.
    b = max(1, min(b, pl.cdiv(nc, 4)))
    grid = (pl.cdiv(nc, b),)

    vmem_limit = int(min(48 * 1024 * 1024,
                         max(16 * 1024 * 1024, per_slab * b + 4 * 1024 * 1024)))

    out = pl.pallas_call(
        _interp_pad_kernel,
        out_shape=jax.ShapeDtypeStruct((nc, h + 2, w + 2), x.dtype),
        grid=grid,
        in_specs=[pl.BlockSpec((b, h, w), lambda i: (i, 0, 0))],
        out_specs=pl.BlockSpec((b, h + 2, w + 2), lambda i: (i, 0, 0)),
        compiler_params=pltpu.CompilerParams(
            dimension_semantics=("parallel",),
            vmem_limit_bytes=vmem_limit,
        ),
    )(x_flat)

    return out.reshape(n, c, h + 2, w + 2)


def _reference(x):
    """Plain-JAX reference mirroring the PyTorch code exactly."""
    y = jnp.pad(x, ((0, 0), (0, 0), (1, 1), (1, 1)))
    y = y.at[:, :, 0, 1:-1].set(2 * x[:, :, 0, :] - x[:, :, 1, :])
    y = y.at[:, :, 1:-1, 0].set(2 * x[:, :, :, 0] - x[:, :, :, 1])
    y = y.at[:, :, -1, 1:-1].set(2 * x[:, :, -1, :] - x[:, :, -2, :])
    y = y.at[:, :, 1:-1, -1].set(2 * x[:, :, :, -1] - x[:, :, :, -2])
    y = y.at[:, :, 0, 0].set((y[:, :, 0, 1] + y[:, :, 1, 0]) / 2)
    y = y.at[:, :, 0, -1].set((y[:, :, 0, -2] + y[:, :, 1, -1]) / 2)
    y = y.at[:, :, -1, 0].set((y[:, :, -1, 1] + y[:, :, -2, 0]) / 2)
    y = y.at[:, :, -1, -1].set((y[:, :, -2, -1] + y[:, :, -1, -2]) / 2)
    return y


if __name__ == "__main__":
    key = jax.random.PRNGKey(0)
    x = jax.random.normal(key, (2, 4, 16, 16), dtype=jnp.float32)

    y = interpolation_padding_2d(x)
    y = jax.block_until_ready(y)

    y_ref = _reference(x)
    assert y.shape == (2, 4, 18, 18), y.shape
    assert jnp.allclose(y, y_ref, atol=1e-5, rtol=1e-5), "mismatch vs reference"

    print("KERNEL_OK")
</pallas_src>

<mosaic_0001>
module attributes {stable_mosaic.version = 11 : i64} {
  func.func @_interp_pad_kernel(%arg0: i32, %arg1: memref<2x16x16xf32, #tpu.memory_space<vmem>>, %arg2: memref<2x18x18xf32, #tpu.memory_space<vmem>>) attributes {dimension_semantics = [#tpu.dimension_semantics<parallel>], iteration_bounds = array<i64: 4>, scalar_prefetch = 0 : i64, scratch_operands = 0 : i64, tpu.core_type = #tpu.core_type<tc>, window_params = [{transform_indices = @transform_0, window_bounds = array<i64: 2, 16, 16>}, {transform_indices = @transform_1, window_bounds = array<i64: 2, 18, 18>}]} {
    %c0 = arith.constant 0 : index
    %c0_0 = arith.constant 0 : index
    %c0_1 = arith.constant 0 : index
    %0 = vector.load %arg1[%c0, %c0_0, %c0_1] : memref<2x16x16xf32, #tpu.memory_space<vmem>>, vector<2x16x16xf32>
    %1 = vector.extract_strided_slice %0 {offsets = [0, 0, 0], sizes = [2, 1, 16], strides = [1, 1, 1]} : vector<2x16x16xf32> to vector<2x1x16xf32>
    %2 = vector.extract_strided_slice %0 {offsets = [0, 1, 0], sizes = [2, 1, 16], strides = [1, 1, 1]} : vector<2x16x16xf32> to vector<2x1x16xf32>
    %3 = vector.extract_strided_slice %0 {offsets = [0, 15, 0], sizes = [2, 1, 16], strides = [1, 1, 1]} : vector<2x16x16xf32> to vector<2x1x16xf32>
    %4 = vector.extract_strided_slice %0 {offsets = [0, 14, 0], sizes = [2, 1, 16], strides = [1, 1, 1]} : vector<2x16x16xf32> to vector<2x1x16xf32>
    %5 = vector.extract_strided_slice %0 {offsets = [0, 0, 0], sizes = [2, 16, 1], strides = [1, 1, 1]} : vector<2x16x16xf32> to vector<2x16x1xf32>
    %6 = vector.extract_strided_slice %0 {offsets = [0, 0, 1], sizes = [2, 16, 1], strides = [1, 1, 1]} : vector<2x16x16xf32> to vector<2x16x1xf32>
    %7 = vector.extract_strided_slice %0 {offsets = [0, 0, 15], sizes = [2, 16, 1], strides = [1, 1, 1]} : vector<2x16x16xf32> to vector<2x16x1xf32>
    %8 = vector.extract_strided_slice %0 {offsets = [0, 0, 14], sizes = [2, 16, 1], strides = [1, 1, 1]} : vector<2x16x16xf32> to vector<2x16x1xf32>
    %cst = arith.constant 2.000000e+00 : f32
    %9 = vector.broadcast %cst : f32 to vector<2x1x16xf32>
    %10 = arith.mulf %9, %1 : vector<2x1x16xf32>
    %11 = arith.subf %10, %2 : vector<2x1x16xf32>
    %cst_2 = arith.constant 2.000000e+00 : f32
    %12 = vector.broadcast %cst_2 : f32 to vector<2x1x16xf32>
    %13 = arith.mulf %12, %3 : vector<2x1x16xf32>
    %14 = arith.subf %13, %4 : vector<2x1x16xf32>
    %cst_3 = arith.constant 2.000000e+00 : f32
    %15 = vector.broadcast %cst_3 : f32 to vector<2x16x1xf32>
    %16 = arith.mulf %15, %5 : vector<2x16x1xf32>
    %17 = arith.subf %16, %6 : vector<2x16x1xf32>
    %cst_4 = arith.constant 2.000000e+00 : f32
    %18 = vector.broadcast %cst_4 : f32 to vector<2x16x1xf32>
    %19 = arith.mulf %18, %7 : vector<2x16x1xf32>
    %20 = arith.subf %19, %8 : vector<2x16x1xf32>
    %21 = vector.extract_strided_slice %11 {offsets = [0, 0, 0], sizes = [2, 1, 1], strides = [1, 1, 1]} : vector<2x1x16xf32> to vector<2x1x1xf32>
    %22 = vector.extract_strided_slice %17 {offsets = [0, 0, 0], sizes = [2, 1, 1], strides = [1, 1, 1]} : vector<2x16x1xf32> to vector<2x1x1xf32>
    %23 = arith.addf %21, %22 : vector<2x1x1xf32>
    %cst_5 = arith.constant 5.000000e-01 : f32
    %24 = vector.broadcast %cst_5 : f32 to vector<2x1x1xf32>
    %25 = arith.mulf %23, %24 : vector<2x1x1xf32>
    %26 = vector.extract_strided_slice %11 {offsets = [0, 0, 15], sizes = [2, 1, 1], strides = [1, 1, 1]} : vector<2x1x16xf32> to vector<2x1x1xf32>
    %27 = vector.extract_strided_slice %20 {offsets = [0, 0, 0], sizes = [2, 1, 1], strides = [1, 1, 1]} : vector<2x16x1xf32> to vector<2x1x1xf32>
    %28 = arith.addf %26, %27 : vector<2x1x1xf32>
    %cst_6 = arith.constant 5.000000e-01 : f32
    %29 = vector.broadcast %cst_6 : f32 to vector<2x1x1xf32>
    %30 = arith.mulf %28, %29 : vector<2x1x1xf32>
    %31 = vector.extract_strided_slice %14 {offsets = [0, 0, 0], sizes = [2, 1, 1], strides = [1, 1, 1]} : vector<2x1x16xf32> to vector<2x1x1xf32>
    %32 = vector.extract_strided_slice %17 {offsets = [0, 15, 0], sizes = [2, 1, 1], strides = [1, 1, 1]} : vector<2x16x1xf32> to vector<2x1x1xf32>
    %33 = arith.addf %31, %32 : vector<2x1x1xf32>
    %cst_7 = arith.constant 5.000000e-01 : f32
    %34 = vector.broadcast %cst_7 : f32 to vector<2x1x1xf32>
    %35 = arith.mulf %33, %34 : vector<2x1x1xf32>
    %36 = vector.extract_strided_slice %14 {offsets = [0, 0, 15], sizes = [2, 1, 1], strides = [1, 1, 1]} : vector<2x1x16xf32> to vector<2x1x1xf32>
    %37 = vector.extract_strided_slice %20 {offsets = [0, 15, 0], sizes = [2, 1, 1], strides = [1, 1, 1]} : vector<2x16x1xf32> to vector<2x1x1xf32>
    %38 = arith.addf %36, %37 : vector<2x1x1xf32>
    %cst_8 = arith.constant 5.000000e-01 : f32
    %39 = vector.broadcast %cst_8 : f32 to vector<2x1x1xf32>
    %40 = arith.mulf %38, %39 : vector<2x1x1xf32>
    %41 = tpu.concatenate %17, %0, %20 in 2 : vector<2x16x1xf32>, vector<2x16x16xf32>, vector<2x16x1xf32> -> vector<2x16x18xf32>
    %42 = tpu.concatenate %25, %11, %30 in 2 : vector<2x1x1xf32>, vector<2x1x16xf32>, vector<2x1x1xf32> -> vector<2x1x18xf32>
    %43 = tpu.concatenate %35, %14, %40 in 2 : vector<2x1x1xf32>, vector<2x1x16xf32>, vector<2x1x1xf32> -> vector<2x1x18xf32>
    %44 = tpu.concatenate %42, %41, %43 in 1 : vector<2x1x18xf32>, vector<2x16x18xf32>, vector<2x1x18xf32> -> vector<2x18x18xf32>
    %c0_9 = arith.constant 0 : index
    %c0_10 = arith.constant 0 : index
    %c0_11 = arith.constant 0 : index
    %45 = vector.load %arg2[%c0_9, %c0_10, %c0_11] : memref<2x18x18xf32, #tpu.memory_space<vmem>>, vector<2x18x18xf32>
    tpu.vector_store %arg2[%c0_9, %c0_10, %c0_11], %44 {strides = array<i32>} : memref<2x18x18xf32, #tpu.memory_space<vmem>>, vector<2x18x18xf32>,
    return
  }
  func.func @transform_0(%arg0: i32) -> (i32, i32, i32) {
    %c0_i32 = arith.constant 0 : i32
    %c0_i32_0 = arith.constant 0 : i32
    %c0_i32_1 = arith.constant 0 : i32
    return %arg0, %c0_i32, %c0_i32_0 : i32, i32, i32
  }
  func.func @transform_1(%arg0: i32) -> (i32, i32, i32) {
    %c0_i32 = arith.constant 0 : i32
    %c0_i32_0 = arith.constant 0 : i32
    %c0_i32_1 = arith.constant 0 : i32
    return %arg0, %c0_i32, %c0_i32_0 : i32, i32, i32
  }
}

</mosaic_0001>

<llo_original>
// kernel: tpu_custom_call.1
$region0: #{tpu_custom_call.1}
  #allocation0 [shape = 'u32[]', space=smem, size = 0x4, offset = 0x4, fixed_abs, tag = 'smem constant byte address 0x4 - core index']
  #allocation1 [shape = 'u32[144,128]{1,0:T(1,128)}', space=vmem, size = 0x12000, scoped, tag = 'internal scratch']
  %s0 = inlined_call_operand.hbm [shape: f32[8,16,16], index: 0, kind: input, shape index: {}]
  %s1 = inlined_call_operand.vmem [shape: f32[8,18,18], index: 1, kind: output, shape index: {}]
  %s2 = sld [smem:[#allocation0]]
  $region41: #{tpu_custom_call.1} parent=0
    _
  %s4 = ssub.s32 1, %s2
  %s5 = scalar_select 0, %s4, %s2
  $region1: #{tpu_custom_call.1} parent=0
    #allocation2 [shape = 'u8[32768]{0}', space=vmem, size = 0x8000, scoped, tag = 'input window, operand 0']
    #allocation3 [shape = 's32[2]{0}', space=sflag, size = 0x8, scoped, tag = 'scoped memory for tpu_custom_call.1']
    %6 = vsyncpa [#allocation3], 0
    %s7 = scalar_lea.sflag [#allocation3], 1
    %8 = vsyncpa %s7, 0
    loop: start=0, step=1, limit=6
    $region2: #{tpu_custom_call.1} parent=1 // loop_pre_header
      _
    $region3: #{tpu_custom_call.1} parent=1 // loop_header
      %s10 = sphi 0, %s14
      %p11 = scmp.ge.s32.totalorder %s10, 6
      %s20 = sphi 0, %s22
      %s23 = sphi 0, %s20
      %s24 = sphi 0, %s23
      %s40 = sphi 0, %s24
      %s46 = sphi 0, %s48
      %s49 = sphi 0, %s46
      %s50 = sphi 0, %s49
      %s66 = sphi 0, %s50
    $region4: #{tpu_custom_call.1} parent=1 // loop_header_branch
      %13 = sbr.rel (%p11) target = $region8
    $region5: #{tpu_custom_call.1} parent=1 // loop_body
      %s15 = ssub.s32 %s10, 1
      %s16 = ssub.s32 %s10, 2
      %s17 = sadd.s32 %s10, 1
      %s18 = ssub.s32 %s10, %s17
      %p19 = scmp.eq.s32.totalorder %s18, 0
      %s21 = sadd.s32 %s20, 1
      %s22 = scalar_select %p19, %s20, %s21
      %p25 = pneg %p19
      %p26 = scmp.eq.s32.totalorder %s10, 3
      %p27 = por %p25, %p26
      %p28 = scmp.ne.s32.totalorder %s20, %s23
      %p29 = scmp.eq.s32.totalorder %s10, 0
      %p30 = por %p28, %p29
      %p31 = scmp.ne.s32.totalorder %s20, %s23
      %p32 = scmp.eq.s32.totalorder %s15, 3
      %p33 = por %p31, %p32
      %p34 = scmp.ne.s32.totalorder %s23, %s24
      %p35 = scmp.eq.s32.totalorder %s15, 0
      %p36 = por %p34, %p35
      %p37 = scmp.ne.s32.totalorder %s23, %s24
      %p38 = scmp.eq.s32.totalorder %s16, 3
      %p39 = por %p37, %p38
      %p41 = scmp.ne.s32.totalorder %s24, %s40
      %p42 = scmp.eq.s32.totalorder %s16, 0
      %p43 = por %p41, %p42
      %s44 = ssub.s32 %s10, %s17
      %p45 = scmp.eq.s32.totalorder %s44, 0
      %s47 = sadd.s32 %s46, 1
      %s48 = scalar_select %p45, %s46, %s47
      %p51 = pneg %p45
      %p52 = scmp.eq.s32.totalorder %s10, 3
      %p53 = por %p51, %p52
      %p54 = scmp.ne.s32.totalorder %s46, %s49
      %p55 = scmp.eq.s32.totalorder %s10, 0
      %p56 = por %p54, %p55
      %p57 = scmp.ne.s32.totalorder %s46, %s49
      %p58 = scmp.eq.s32.totalorder %s15, 3
      %p59 = por %p57, %p58
      %p60 = scmp.ne.s32.totalorder %s49, %s50
      %p61 = scmp.eq.s32.totalorder %s15, 0
      %p62 = por %p60, %p61
      %p63 = scmp.ne.s32.totalorder %s49, %s50
      %p64 = scmp.eq.s32.totalorder %s16, 3
      %p65 = por %p63, %p64
      %p67 = scmp.ne.s32.totalorder %s50, %s66
      %p68 = scmp.eq.s32.totalorder %s16, 0
      %p69 = por %p67, %p68
      %p70 = scmp.le.s32.totalorder 1, %s10
      %p71 = scmp.lt.s32.totalorder %s10, 5
      %p72 = pnand %p70, %p71
      %p73 = pneg %p72
      // Predicated region
      $region9: #{tpu_custom_call.1} parent=5 // pred_check
        _
      $region10: #{tpu_custom_call.1} parent=5 // pred_check_branch
        %75 = sbr.rel (%p72) target = $region12
      $region11: #{tpu_custom_call.1} parent=5 // pred_region
        %s76 = ssub.s32 %s10, 1
      $region12: #{tpu_custom_call.1} parent=5 // pred_fallthru
        _
      %p77 = scmp.lt.s32.totalorder %s10, 4
      // Predicated region
      $region13: #{tpu_custom_call.1} parent=5 // pred_check
        %p78 = pneg %p77
      $region14: #{tpu_custom_call.1} parent=5 // pred_check_branch
        %80 = sbr.rel (%p78) target = $region16
      $region15: #{tpu_custom_call.1} parent=5 // pred_region
        // Predicated region
        $region17: #{tpu_custom_call.1} parent=15 // pred_check
          %p81 = pneg %p30
        $region18: #{tpu_custom_call.1} parent=15 // pred_check_branch
          %83 = sbr.rel (%p81) target = $region20
        $region19: #{tpu_custom_call.1} parent=15 // pred_region
          %s84 = sand.u32 %s20, 1
          %s85 = scalar_lea.sflag [#allocation3], %s84
          %s86 = sand.u32 %s20, 1
          %s87 = smul.addr %s86, 32
          %s88 = scalar_lea.vmem [#allocation2], %s87
          %s89 = smul.u32 2, %s10
          %s91 = ssub.s32 512, 512
          %92 = vsyncadd %s85, %s91
          %s93 = smul.addr %s89, 2
          %s94 = smul.addr %s93, 128
          %s95 = scalar_lea.hbm %s0, %s94
          %s96 = sshll.u32 %s88, 4
          %s97 = int_to_ptr.vmem [resolvable:$true] %s96
          %102 = dma.hbm_to_vmem [thread:$0]  %s95, 512, %s97, %s85, 128, 128, 8
        $region20: #{tpu_custom_call.1} parent=15 // pred_fallthru
          _
      $region16: #{tpu_custom_call.1} parent=5 // pred_fallthru
        _
      %p103 = scmp.le.s32.totalorder 1, %s10
      %p104 = scmp.lt.s32.totalorder %s10, 5
      %p105 = pnand %p103, %p104
      %p106 = pneg %p105
      // Predicated region
      $region21: #{tpu_custom_call.1} parent=5 // pred_check
        _
      $region22: #{tpu_custom_call.1} parent=5 // pred_check_branch
        %108 = sbr.rel (%p105) target = $region24
      $region23: #{tpu_custom_call.1} parent=5 // pred_region
        %s109 = ssub.s32 %s10, 1
        %s110 = sand.u32 %s23, 1
        %s111 = scalar_lea.sflag [#allocation3], %s110
        %s112 = sand.u32 %s23, 1
        %s113 = smul.addr %s112, 32
        %s114 = scalar_lea.vmem [#allocation2], %s113
        // Predicated region
        $region25: #{tpu_custom_call.1} parent=23 // pred_check
          %p115 = pneg %p36
        $region26: #{tpu_custom_call.1} parent=23 // pred_check_branch
          %117 = sbr.rel (%p115) target = $region28
        $region27: #{tpu_custom_call.1} parent=23 // pred_region
          %118 = dma.done %s111, 512
        $region28: #{tpu_custom_call.1} parent=23 // pred_fallthru
          _
        %s119 = sand.u32 %s23, 1
        %s120 = scalar_lea.sflag [#allocation3], %s119
        %s121 = sand.u32 %s23, 1
        %s122 = smul.addr %s121, 32
        %s123 = scalar_lea.vmem [#allocation2], %s122
        %p124 = pneg %p36
        %p125 = pneg %p33
        %p126 = pneg %p62
        %p127 = pneg %p59
        %s128 = smul.u32 2, %s15
        %p129 = scmp.lt.s32.totalorder %s128, 7
        %s130 = scalar_select %p129, %s128, 7
        %s131 = smul.addr %s130, 3
        %s132 = smul.addr %s131, 8
        %s133 = scalar_lea.vmem %s1, %s132
        %s134 = smul.u32 2, %s15
        %s135 = smul.u32 2, %s15
        %p136 = scmp.lt.s32.totalorder %s135, 7
        %s137 = scalar_select %p136, %s135, 7
        %s138 = smul.addr %s137, 3
        %s139 = smul.addr %s138, 8
        %s140 = scalar_lea.vmem %s1, %s139
        %s141 = smul.u32 2, %s15
        %v142 = vld [vmem:[%s114] sm:$0xff]
        %v143 = vld [vmem:[%s114 + $0x8] sm:$0xff]
        %v144 = vld [vmem:[%s114 + $0x10] sm:$0xff]
        %v145 = vld [vmem:[%s114 + $0x18] sm:$0xff]
        %v146 = vmul.f32 %v142, 2.0
        %v147 = vmul.f32 %v144, 2.0
        %v150 = vrot.slane %v142, 1
        %v151 = vrot.slane %v144, 1
        %v154 = vsub.f32 %v146, %v150
        %v155 = vsub.f32 %v147, %v151
        %v156 = vmul.f32 %v143, 2.0
        %v157 = vmul.f32 %v145, 2.0
        %v160 = vrot.slane %v143, 7
        %v161 = vrot.slane %v145, 7
        %v164 = vsub.f32 %v156, %v160
        %v165 = vsub.f32 %v157, %v161
        %166 = vrot.lane.b32.xlu0 %v142, 127
        %v167 = vpop.permute.xlu0 %166
        %168 = vrot.lane.b32.xlu0 %v143, 127
        %v169 = vpop.permute.xlu0 %168
        %170 = vrot.lane.b32.xlu0 %v144, 127
        %v171 = vpop.permute.xlu0 %170
        %172 = vrot.lane.b32.xlu0 %v145, 127
        %v173 = vpop.permute.xlu0 %172
        %v178 = vsub.f32 %v146, %v167
        %v179 = vsub.f32 %v156, %v169
        %v180 = vsub.f32 %v147, %v171
        %v181 = vsub.f32 %v157, %v173
        %182 = vrot.lane.b32.xlu0 %v142, 1
        %v183 = vpop.permute.xlu0 %182
        %184 = vrot.lane.b32.xlu0 %v143, 1
        %v185 = vpop.permute.xlu0 %184
        %186 = vrot.lane.b32.xlu0 %v144, 1
        %v187 = vpop.permute.xlu0 %186
        %188 = vrot.lane.b32.xlu0 %v145, 1
        %v189 = vpop.permute.xlu0 %188
        %v194 = vsub.f32 %v146, %v183
        %v195 = vsub.f32 %v156, %v185
        %v196 = vsub.f32 %v147, %v187
        %v197 = vsub.f32 %v157, %v189
        %v198 = vadd.f32 %v154, %v178
        %v199 = vadd.f32 %v155, %v180
        %v200 = vmul.f32 %v198, 0.5
        %v201 = vmul.f32 %v199, 0.5
        %v202 = vadd.f32 %v154, %v194
        %v203 = vadd.f32 %v155, %v196
        %v204 = vmul.f32 %v202, 0.5
        %v205 = vmul.f32 %v203, 0.5
        %v206 = vadd.f32 %v164, %v179
        %v207 = vadd.f32 %v165, %v181
        %v208 = vmul.f32 %v206, 0.5
        %v209 = vmul.f32 %v207, 0.5
        %v210 = vadd.f32 %v164, %v195
        %v211 = vadd.f32 %v165, %v197
        %v212 = vmul.f32 %v210, 0.5
        %v213 = vmul.f32 %v211, 0.5
        %218 = vrot.lane.b32.xlu0 %v194, 2
        %v219 = vpop.permute.xlu0 %218
        %220 = vrot.lane.b32.xlu0 %v195, 2
        %v221 = vpop.permute.xlu0 %220
        %222 = vrot.lane.b32.xlu0 %v196, 2
        %v223 = vpop.permute.xlu0 %222
        %224 = vrot.lane.b32.xlu0 %v197, 2
        %v225 = vpop.permute.xlu0 %224
        %vm230 = vcmask 7168
        %v231 = vsel %vm230, %v178, %v183
        %v232 = vsel %vm230, %v179, %v185
        %v233 = vsel %vm230, %v180, %v187
        %v234 = vsel %vm230, %v181, %v189
        %vm235 = vcmask 138240
        %v236 = vsel %vm235, %v231, %v219
        %v237 = vsel %vm235, %v232, %v221
        %v238 = vsel %vm235, %v233, %v223
        %v239 = vsel %vm235, %v234, %v225
        %242 = vrot.lane.b32.xlu0 %v154, 1
        %v243 = vpop.permute.xlu0 %242
        %244 = vrot.lane.b32.xlu0 %v155, 1
        %v245 = vpop.permute.xlu0 %244
        %250 = vrot.lane.b32.xlu0 %v204, 2
        %v251 = vpop.permute.xlu0 %250
        %252 = vrot.lane.b32.xlu0 %v205, 2
        %v253 = vpop.permute.xlu0 %252
        %v256 = vsel %vm230, %v200, %v243
        %v257 = vsel %vm230, %v201, %v245
        %v258 = vsel %vm235, %v256, %v251
        %v259 = vsel %vm235, %v257, %v253
        %262 = vrot.lane.b32.xlu0 %v164, 1
        %v263 = vpop.permute.xlu0 %262
        %264 = vrot.lane.b32.xlu0 %v165, 1
        %v265 = vpop.permute.xlu0 %264
        %270 = vrot.lane.b32.xlu0 %v212, 2
        %v271 = vpop.permute.xlu0 %270
        %272 = vrot.lane.b32.xlu0 %v213, 2
        %v273 = vpop.permute.xlu0 %272
        %v276 = vsel %vm230, %v208, %v263
        %v277 = vsel %vm230, %v209, %v265
        %v278 = vsel %vm235, %v276, %v271
        %v279 = vsel %vm235, %v277, %v273
        %vm284 = vcmask 1040384
        %v285 = vrot.slane %v236, 7
        %v286 = vrot.slane %v237, 7
        %v287 = vsel %vm284, %v285, %v286
        %v288 = vrot.slane %v238, 7
        %v289 = vrot.slane %v239, 7
        %v290 = vsel %vm284, %v288, %v289
        %v299 = vrot.slane %v278, 6
        %v300 = vrot.slane %v279, 6
        %v303 = vsel %vm284, %v258, %v285
        %v304 = vsel %vm284, %v259, %v288
        %v305 = vsel %vm284, %v286, %v299
        %v306 = vsel %vm284, %v289, %v300
        %vm307 = vcmask 146432
        %308 = vst.msk [vmem:[%s140] sm:$0xff] %vm307, %v303
        %309 = vst.msk [vmem:[%s140 + $0x8] sm:$0xff] %vm307, %v287
        %vm310 = vcmask 140288
        %311 = vst.msk [vmem:[%s140 + $0x10] sm:$0x3] %vm310, %v305
        %312 = vst.msk [vmem:[%s140 + $0x18] sm:$0xff] %vm307, %v304
        %313 = vst.msk [vmem:[%s140 + $0x20] sm:$0xff] %vm307, %v290
        %314 = vst.msk [vmem:[%s140 + $0x28] sm:$0x3] %vm310, %v306
        %s315 = smul.u32 2, %s15
        %p316 = scmp.lt.s32.totalorder %s315, 7
        %s317 = scalar_select %p316, %s315, 7
        %s318 = smul.addr %s317, 3
        %s319 = smul.addr %s318, 8
        %s320 = scalar_lea.vmem %s1, %s319
        // Predicated region
        $region29: #{tpu_custom_call.1} parent=23 // pred_check
          %p321 = pneg %p59
        $region30: #{tpu_custom_call.1} parent=23 // pred_check_branch
          %323 = sbr.rel (%p321) target = $region32
        $region31: #{tpu_custom_call.1} parent=23 // pred_region
          %s324 = smul.u32 2, %s15
        $region32: #{tpu_custom_call.1} parent=23 // pred_fallthru
          _
      $region24: #{tpu_custom_call.1} parent=5 // pred_fallthru
        _
      %p325 = scmp.le.s32.totalorder 2, %s10
      // Predicated region
      $region33: #{tpu_custom_call.1} parent=5 // pred_check
        %p326 = pneg %p325
      $region34: #{tpu_custom_call.1} parent=5 // pred_check_branch
        %328 = sbr.rel (%p326) target = $region36
      $region35: #{tpu_custom_call.1} parent=5 // pred_region
        %s329 = ssub.s32 %s10, 2
        // Predicated region
        $region37: #{tpu_custom_call.1} parent=35 // pred_check
          %p330 = pneg %p65
        $region38: #{tpu_custom_call.1} parent=35 // pred_check_branch
          %332 = sbr.rel (%p330) target = $region40
        $region39: #{tpu_custom_call.1} parent=35 // pred_region
          %s333 = smul.u32 2, %s16
          %p334 = scmp.lt.s32.totalorder %s333, 7
          %s335 = scalar_select %p334, %s333, 7
          %s336 = smul.addr %s335, 3
          %s337 = smul.addr %s336, 8
          %s338 = scalar_lea.vmem %s1, %s337
        $region40: #{tpu_custom_call.1} parent=35 // pred_fallthru
          _
      $region36: #{tpu_custom_call.1} parent=5 // pred_fallthru
        _
    $region6: #{tpu_custom_call.1} parent=1 // loop_footer
      %s14 = sadd.s32 1, %s10
    $region7: #{tpu_custom_call.1} parent=1 // loop_footer_branch
      %9 = sbr.rel target = $region3
    $region8: #{tpu_custom_call.1} parent=1 // loop_exit
      _
    %339 = vsyncpa [#allocation3], 1
    %s340 = scalar_lea.sflag [#allocation3], 1
    %341 = vsyncpa %s340, 1

</llo_original>
